<compile_context>
chip_gen: v5e
topology: v5e:2x2
jax: 0.10.0
libtpu: 0.0.40
codegen_flags: <defaults>
</compile_context>

<pallas_src>
import functools

import jax
import jax.numpy as jnp
from jax.experimental import pallas as pl
from jax.experimental.pallas import tpu as pltpu


def _ensemble_kernel(x_ref, w_ref, b_ref, o_ref, *, num_members, num_classes):
    # One wide matmul for all ensemble members: [TB, H] x [H, M*C] -> [TB, M*C]
    logits = jnp.dot(
        x_ref[...], w_ref[...], preferred_element_type=jnp.float32
    ) + b_ref[...].astype(jnp.float32)

    inv_m = 1.0 / num_members  # Python constant, folded at trace time.
    acc = jnp.zeros((x_ref.shape[0], num_classes), jnp.float32)

    # Static unroll over members (M is small); each slice is lane-aligned
    # because num_classes is a multiple of 128 (or the full lane extent).
    for m in range(num_members):
        lm = logits[:, m * num_classes:(m + 1) * num_classes]
        mx = jnp.max(lm, axis=-1, keepdims=True)
        e = jnp.exp(lm - mx)
        denom = jnp.sum(e, axis=-1, keepdims=True)
        # EUP approximate reciprocal + one Newton-Raphson step on the [TB,1]
        # vector: near-f32 accuracy, keeps the divide off the VPU hot path.
        r = pl.reciprocal(denom, approx=True)
        r = r * (2.0 - denom * r)
        acc = acc + e * r

    o_ref[...] = (acc * inv_m).astype(o_ref.dtype)


def ensemble_forward(x, weights, biases, *, block_b=None):
    """x: [B, H], weights: [M, H, C], biases: [M, 1, C] -> [B, C] (f32)."""
    B, H = x.shape
    M, H2, C = weights.shape
    assert H2 == H and biases.shape == (M, 1, C)

    # Fold the member axis into the lane dimension:
    #   w_folded[:, m*C:(m+1)*C] == weights[m],  b_folded[0, m*C:(m+1)*C] == biases[m, 0]
    w_folded = jnp.transpose(weights, (1, 0, 2)).reshape(H, M * C)
    b_folded = biases.reshape(1, M * C)

    if block_b is None:
        block_b = B if B <= 512 else 512
    assert B % block_b == 0, "batch must be divisible by the batch tile"

    kernel = functools.partial(_ensemble_kernel, num_members=M, num_classes=C)

    return pl.pallas_call(
        kernel,
        out_shape=jax.ShapeDtypeStruct((B, C), jnp.float32),
        grid_spec=pltpu.PrefetchScalarGridSpec(
            num_scalar_prefetch=0,
            grid=(B // block_b,),
            in_specs=[
                pl.BlockSpec((block_b, H), lambda i: (i, 0)),     # x tile
                pl.BlockSpec((H, M * C), lambda i: (0, 0)),       # all weights, resident
                pl.BlockSpec((1, M * C), lambda i: (0, 0)),       # all biases, resident
            ],
            out_specs=pl.BlockSpec((block_b, C), lambda i: (i, 0)),
        ),
        compiler_params=pltpu.CompilerParams(
            # Batch tiles are independent -> shardable across TensorCores (v7x).
            dimension_semantics=("parallel",),
        ),
    )(x, w_folded, b_folded)


def ensemble_reference(x, weights, biases):
    # Plain-JAX reference mirroring the PyTorch forward (full-precision matmul).
    outs = [
        jnp.dot(x, weights[m], precision=jax.lax.Precision.HIGHEST) + biases[m, 0]
        for m in range(weights.shape[0])
    ]
    probs = [jax.nn.softmax(o, axis=-1) for o in outs]
    return sum(probs) / len(probs)


if __name__ == "__main__":
    key = jax.random.PRNGKey(0)
    B, H, C, M = 8, 32, 128, 3  # batch, hidden, classes, ensemble size

    kx, kw, kb = jax.random.split(key, 3)
    x = jax.random.normal(kx, (B, H), dtype=jnp.float32)
    # Deterministic synthetic "member model" parameters.
    weights = jax.random.normal(kw, (M, H, C), dtype=jnp.float32) * 0.1
    biases = jax.random.normal(kb, (M, 1, C), dtype=jnp.float32) * 0.1

    out = ensemble_forward(x, weights, biases)
    out = jax.block_until_ready(out)

    ref = ensemble_reference(x, weights, biases)
    assert out.shape == (B, C)
    assert jnp.allclose(out, ref, atol=1e-4, rtol=1e-4)
    # Average of softmaxes: rows should sum to 1.
    assert jnp.allclose(jnp.sum(out, axis=-1), 1.0, atol=1e-4)

    print("KERNEL_OK")
</pallas_src>

<mosaic_0001>
module attributes {stable_mosaic.version = 11 : i64} {
  func.func @_ensemble_kernel(%arg0: i32, %arg1: memref<8x32xf32, #tpu.memory_space<vmem>>, %arg2: memref<32x384xf32, #tpu.memory_space<vmem>>, %arg3: memref<1x384xf32, #tpu.memory_space<vmem>>, %arg4: memref<8x128xf32, #tpu.memory_space<vmem>>) attributes {dimension_semantics = [#tpu.dimension_semantics<parallel>], iteration_bounds = array<i64: 1>, scalar_prefetch = 0 : i64, scratch_operands = 0 : i64, tpu.core_type = #tpu.core_type<tc>, window_params = [{transform_indices = @transform_0, window_bounds = array<i64: 8, 32>}, {pipeline_mode = #tpu.pipeline_mode<synchronous>, transform_indices = @transform_1, window_bounds = array<i64: 32, 384>}, {pipeline_mode = #tpu.pipeline_mode<synchronous>, transform_indices = @transform_2, window_bounds = array<i64: 1, 384>}, {transform_indices = @transform_3, window_bounds = array<i64: 8, 128>}]} {
    %c0 = arith.constant 0 : index
    %c0_0 = arith.constant 0 : index
    %0 = vector.load %arg1[%c0, %c0_0] : memref<8x32xf32, #tpu.memory_space<vmem>>, vector<8x32xf32>
    %c0_1 = arith.constant 0 : index
    %c0_2 = arith.constant 0 : index
    %1 = vector.load %arg2[%c0_1, %c0_2] : memref<32x384xf32, #tpu.memory_space<vmem>>, vector<32x384xf32>
    %cst = arith.constant dense<0.000000e+00> : vector<8x384xf32>
    %2 = tpu.matmul %0, %1, %cst {dimension_numbers = #tpu.dot_dimension_numbers<[1], [0], [0], [1], [0, 0, 1, 1], [], []>} : vector<8x32xf32>, vector<32x384xf32>, vector<8x384xf32> -> vector<8x384xf32>
    %c0_3 = arith.constant 0 : index
    %c0_4 = arith.constant 0 : index
    %3 = vector.load %arg3[%c0_3, %c0_4] : memref<1x384xf32, #tpu.memory_space<vmem>>, vector<1x384xf32>
    %4 = vector.broadcast %3 : vector<1x384xf32> to vector<8x384xf32>
    %5 = arith.addf %2, %4 : vector<8x384xf32>
    %cst_5 = arith.constant 0.000000e+00 : f32
    %6 = vector.broadcast %cst_5 : f32 to vector<8x128xf32>
    %7 = vector.extract_strided_slice %5 {offsets = [0, 0], sizes = [8, 128], strides = [1, 1]} : vector<8x384xf32> to vector<8x128xf32>
    %cst_6 = arith.constant dense<0xFF800000> : vector<8xf32>
    %8 = vector.multi_reduction <maximumf>, %7, %cst_6 [1] : vector<8x128xf32> to vector<8xf32>
    %9 = vector.shape_cast %8 : vector<8xf32> to vector<8x1xf32>
    %10 = vector.broadcast %9 : vector<8x1xf32> to vector<8x128xf32>
    %11 = arith.subf %7, %10 : vector<8x128xf32>
    %12 = math.exp %11 : vector<8x128xf32>
    %cst_7 = arith.constant dense<0.000000e+00> : vector<8xf32>
    %13 = vector.multi_reduction <add>, %12, %cst_7 [1] : vector<8x128xf32> to vector<8xf32>
    %14 = vector.shape_cast %13 : vector<8xf32> to vector<8x1xf32>
    %15 = tpu.reciprocal %14 {approx = true} : vector<8x1xf32> -> vector<8x1xf32>
    %16 = arith.mulf %14, %15 : vector<8x1xf32>
    %cst_8 = arith.constant 2.000000e+00 : f32
    %17 = vector.broadcast %cst_8 : f32 to vector<8x1xf32>
    %18 = arith.subf %17, %16 : vector<8x1xf32>
    %19 = arith.mulf %15, %18 : vector<8x1xf32>
    %20 = vector.broadcast %19 : vector<8x1xf32> to vector<8x128xf32>
    %21 = arith.mulf %12, %20 : vector<8x128xf32>
    %22 = arith.addf %6, %21 : vector<8x128xf32>
    %23 = vector.extract_strided_slice %5 {offsets = [0, 128], sizes = [8, 128], strides = [1, 1]} : vector<8x384xf32> to vector<8x128xf32>
    %cst_9 = arith.constant dense<0xFF800000> : vector<8xf32>
    %24 = vector.multi_reduction <maximumf>, %23, %cst_9 [1] : vector<8x128xf32> to vector<8xf32>
    %25 = vector.shape_cast %24 : vector<8xf32> to vector<8x1xf32>
    %26 = vector.broadcast %25 : vector<8x1xf32> to vector<8x128xf32>
    %27 = arith.subf %23, %26 : vector<8x128xf32>
    %28 = math.exp %27 : vector<8x128xf32>
    %cst_10 = arith.constant dense<0.000000e+00> : vector<8xf32>
    %29 = vector.multi_reduction <add>, %28, %cst_10 [1] : vector<8x128xf32> to vector<8xf32>
    %30 = vector.shape_cast %29 : vector<8xf32> to vector<8x1xf32>
    %31 = tpu.reciprocal %30 {approx = true} : vector<8x1xf32> -> vector<8x1xf32>
    %32 = arith.mulf %30, %31 : vector<8x1xf32>
    %cst_11 = arith.constant 2.000000e+00 : f32
    %33 = vector.broadcast %cst_11 : f32 to vector<8x1xf32>
    %34 = arith.subf %33, %32 : vector<8x1xf32>
    %35 = arith.mulf %31, %34 : vector<8x1xf32>
    %36 = vector.broadcast %35 : vector<8x1xf32> to vector<8x128xf32>
    %37 = arith.mulf %28, %36 : vector<8x128xf32>
    %38 = arith.addf %22, %37 : vector<8x128xf32>
    %39 = vector.extract_strided_slice %5 {offsets = [0, 256], sizes = [8, 128], strides = [1, 1]} : vector<8x384xf32> to vector<8x128xf32>
    %cst_12 = arith.constant dense<0xFF800000> : vector<8xf32>
    %40 = vector.multi_reduction <maximumf>, %39, %cst_12 [1] : vector<8x128xf32> to vector<8xf32>
    %41 = vector.shape_cast %40 : vector<8xf32> to vector<8x1xf32>
    %42 = vector.broadcast %41 : vector<8x1xf32> to vector<8x128xf32>
    %43 = arith.subf %39, %42 : vector<8x128xf32>
    %44 = math.exp %43 : vector<8x128xf32>
    %cst_13 = arith.constant dense<0.000000e+00> : vector<8xf32>
    %45 = vector.multi_reduction <add>, %44, %cst_13 [1] : vector<8x128xf32> to vector<8xf32>
    %46 = vector.shape_cast %45 : vector<8xf32> to vector<8x1xf32>
    %47 = tpu.reciprocal %46 {approx = true} : vector<8x1xf32> -> vector<8x1xf32>
    %48 = arith.mulf %46, %47 : vector<8x1xf32>
    %cst_14 = arith.constant 2.000000e+00 : f32
    %49 = vector.broadcast %cst_14 : f32 to vector<8x1xf32>
    %50 = arith.subf %49, %48 : vector<8x1xf32>
    %51 = arith.mulf %47, %50 : vector<8x1xf32>
    %52 = vector.broadcast %51 : vector<8x1xf32> to vector<8x128xf32>
    %53 = arith.mulf %44, %52 : vector<8x128xf32>
    %54 = arith.addf %38, %53 : vector<8x128xf32>
    %cst_15 = arith.constant 0.333333343 : f32
    %55 = vector.broadcast %cst_15 : f32 to vector<8x128xf32>
    %56 = arith.mulf %54, %55 : vector<8x128xf32>
    %c0_16 = arith.constant 0 : index
    %c0_17 = arith.constant 0 : index
    %57 = vector.load %arg4[%c0_16, %c0_17] : memref<8x128xf32, #tpu.memory_space<vmem>>, vector<8x128xf32>
    tpu.vector_store %arg4[%c0_16, %c0_17], %56 {strides = array<i32>} : memref<8x128xf32, #tpu.memory_space<vmem>>, vector<8x128xf32>,
    return
  }
  func.func @transform_0(%arg0: i32) -> (i32, i32) {
    %c0_i32 = arith.constant 0 : i32
    %c0_i32_0 = arith.constant 0 : i32
    return %arg0, %c0_i32 : i32, i32
  }
  func.func @transform_1(%arg0: i32) -> (i32, i32) {
    %c0_i32 = arith.constant 0 : i32
    %c0_i32_0 = arith.constant 0 : i32
    %c0_i32_1 = arith.constant 0 : i32
    return %c0_i32, %c0_i32_0 : i32, i32
  }
  func.func @transform_2(%arg0: i32) -> (i32, i32) {
    %c0_i32 = arith.constant 0 : i32
    %c0_i32_0 = arith.constant 0 : i32
    %c0_i32_1 = arith.constant 0 : i32
    return %c0_i32, %c0_i32_0 : i32, i32
  }
  func.func @transform_3(%arg0: i32) -> (i32, i32) {
    %c0_i32 = arith.constant 0 : i32
    %c0_i32_0 = arith.constant 0 : i32
    return %arg0, %c0_i32 : i32, i32
  }
}

</mosaic_0001>

<llo_original>
// kernel: tpu_custom_call.1
$region0: #{tpu_custom_call.1}
  #allocation0 [shape = 'u32[]', space=smem, size = 0x4, offset = 0x4, fixed_abs, tag = 'smem constant byte address 0x4 - core index']
  #allocation1 [shape = 'u32[72,128]{1,0:T(1,128)}', space=vmem, size = 0x9000, scoped, tag = 'internal scratch']
  %s0 = inlined_call_operand.hbm [shape: f32[8,32], index: 0, kind: input, shape index: {}]
  %s1 = inlined_call_operand.hbm [shape: f32[32,384], index: 1, kind: input, shape index: {}]
  %s2 = inlined_call_operand.hbm [shape: f32[1,384], index: 2, kind: input, shape index: {}]
  %s3 = inlined_call_operand.hbm [shape: f32[8,128], index: 3, kind: output, shape index: {}]
  %s4 = sld [smem:[#allocation0]]
  $region34: #{tpu_custom_call.1} parent=0
    _
  %s6 = ssub.s32 1, %s4
  %s7 = scalar_select 0, %s6, %s4
  $region1: #{tpu_custom_call.1} parent=0
    #allocation2 [shape = 'u8[4096]{0}', space=vmem, size = 0x1000, scoped, tag = 'input window, operand 0, single buffered']
    #allocation3 [shape = 's32[1]{0}', space=sflag, size = 0x4, scoped, tag = 'scoped memory for tpu_custom_call.1']
    #allocation4 [shape = 's32[1]{0}', space=sflag, size = 0x4, scoped, tag = 'scoped memory for tpu_custom_call.1']
    #allocation5 [shape = 'u8[49152]{0}', space=vmem, size = 0xc000, scoped, tag = 'input window, operand 1, single buffered']
    #allocation6 [shape = 's32[1]{0}', space=sflag, size = 0x4, scoped, tag = 'scoped memory for tpu_custom_call.1']
    #allocation7 [shape = 'u8[1536]{0}', space=vmem, size = 0x800, scoped, tag = 'input window, operand 2, single buffered']
    #allocation8 [shape = 'u8[4096]{0}', space=vmem, size = 0x1000, scoped, tag = 'output window, operand 0, single buffered']
    %8 = vsyncpa [#allocation3], 0
    %9 = vsyncpa [#allocation6], 0
    %10 = vsyncpa [#allocation4], 0
    // Predicated region
    $region2: #{tpu_custom_call.1} parent=1 // pred_check
      _
    $region3: #{tpu_custom_call.1} parent=1 // pred_check_branch
      %12 = sbr.rel (0) target = $region5
    $region4: #{tpu_custom_call.1} parent=1 // pred_region
      %14 = vsyncadd [#allocation3], 0
      %s16 = sshll.u32 %s0, 4
      %s17 = int_to_ptr.hbm [resolvable:$true] %s16
      %s18 = sshll.u32 [#allocation2], 4
      %s19 = int_to_ptr.vmem [resolvable:$true] %s18
      %21 = dma.hbm_to_vmem [thread:$0]  %s17, 128, %s19, [#allocation3]
    $region5: #{tpu_custom_call.1} parent=1 // pred_fallthru
      _
    // Predicated region
    $region6: #{tpu_custom_call.1} parent=1 // pred_check
      _
    $region7: #{tpu_custom_call.1} parent=1 // pred_check_branch
      %23 = sbr.rel (0) target = $region9
    $region8: #{tpu_custom_call.1} parent=1 // pred_region
      %25 = vsyncadd [#allocation6], 0
      %s26 = sshll.u32 %s1, 4
      %s27 = int_to_ptr.hbm [resolvable:$true] %s26
      %s28 = sshll.u32 [#allocation5], 4
      %s29 = int_to_ptr.vmem [resolvable:$true] %s28
      %34 = dma.hbm_to_vmem [thread:$0]  %s27, 1536, %s29, [#allocation6], 384, 384, 24
    $region9: #{tpu_custom_call.1} parent=1 // pred_fallthru
      _
    // Predicated region
    $region10: #{tpu_custom_call.1} parent=1 // pred_check
      _
    $region11: #{tpu_custom_call.1} parent=1 // pred_check_branch
      %36 = sbr.rel (0) target = $region13
    $region12: #{tpu_custom_call.1} parent=1 // pred_region
      %38 = vsyncadd [#allocation6], 0
      %s40 = sshll.u32 %s2, 4
      %s41 = int_to_ptr.hbm [resolvable:$true] %s40
      %s42 = sshll.u32 [#allocation7], 4
      %s43 = int_to_ptr.vmem [resolvable:$true] %s42
      %45 = dma.hbm_to_vmem [thread:$0]  %s41, 48, %s43, [#allocation6]
    $region13: #{tpu_custom_call.1} parent=1 // pred_fallthru
      _
    // Predicated region
    $region14: #{tpu_custom_call.1} parent=1 // pred_check
      _
    $region15: #{tpu_custom_call.1} parent=1 // pred_check_branch
      %47 = sbr.rel (0) target = $region17
    $region16: #{tpu_custom_call.1} parent=1 // pred_region
      %49 = dma.done [#allocation3], 128
    $region17: #{tpu_custom_call.1} parent=1 // pred_fallthru
      _
    // Predicated region
    $region18: #{tpu_custom_call.1} parent=1 // pred_check
      _
    $region19: #{tpu_custom_call.1} parent=1 // pred_check_branch
      %51 = sbr.rel (0) target = $region21
    $region20: #{tpu_custom_call.1} parent=1 // pred_region
      %53 = dma.done [#allocation6], 1536
    $region21: #{tpu_custom_call.1} parent=1 // pred_fallthru
      _
    // Predicated region
    $region22: #{tpu_custom_call.1} parent=1 // pred_check
      _
    $region23: #{tpu_custom_call.1} parent=1 // pred_check_branch
      %55 = sbr.rel (0) target = $region25
    $region24: #{tpu_custom_call.1} parent=1 // pred_region
      %57 = dma.done [#allocation6], 48
    $region25: #{tpu_custom_call.1} parent=1 // pred_fallthru
      _
    %v58 = vld [vmem:[#allocation2] sm:$0xff]
    %v59 = vld [vmem:[#allocation5] sm:$0xff]
    %v60 = vld [vmem:[#allocation5 + $0x8] sm:$0xff]
    %v61 = vld [vmem:[#allocation5 + $0x10] sm:$0xff]
    %v62 = vld [vmem:[#allocation5 + $0x18] sm:$0xff]
    %v63 = vld [vmem:[#allocation5 + $0x20] sm:$0xff]
    %v64 = vld [vmem:[#allocation5 + $0x28] sm:$0xff]
    %v65 = vld [vmem:[#allocation5 + $0x30] sm:$0xff]
    %v66 = vld [vmem:[#allocation5 + $0x38] sm:$0xff]
    %v67 = vld [vmem:[#allocation5 + $0x40] sm:$0xff]
    %v68 = vld [vmem:[#allocation5 + $0x48] sm:$0xff]
    %v69 = vld [vmem:[#allocation5 + $0x50] sm:$0xff]
    %v70 = vld [vmem:[#allocation5 + $0x58] sm:$0xff]
    %v71 = vld [vmem:[#allocation7] sm:$0x7]
    %v73 = vperm.slane %v71, 0
    %v74 = vperm.slane %v71, 1
    %v75 = vperm.slane %v71, 2
    %vm79 = vcmask 261120
    %v81 = vsel %vm79, %v58, 0
    %83 = vmatpush.msra.mxu0 0.0
    %84 = vmatpush.msra.mxu0 0.0
    %85 = vmatpush.msra.mxu0 0.0
    %86 = vmatpush.msra.mxu0 0.0
    %87 = vmatpush.msra.mxu0 0.0
    %88 = vmatpush.msra.mxu0 0.0
    %89 = vmatpush.msra.mxu0 0.0
    %90 = vmatpush.msra.mxu0 0.0
    %91 = vmatpush.msra.mxu0 0.0
    %92 = vmatpush.msra.mxu0 0.0
    %93 = vmatpush.msra.mxu0 0.0
    %94 = vmatpush.msra.mxu0 0.0
    %95 = vmatpush.msra.mxu0 %v68
    %96 = vmatpush.msra.mxu0 %v65
    %97 = vmatpush.msra.mxu0 %v62
    %98 = vmatpush.msra.mxu0 %v59
    %99 = vmatmul.f32.gmra.mxu0 %v81
    %v100 = vpop.f32.mrf.mxu0
    %v101 = vadd.f32 %v73, %v100
    %102 = vdwg.mxu0
    %103 = vmatpush.msra.mxu0 0.0
    %104 = vmatpush.msra.mxu0 0.0
    %105 = vmatpush.msra.mxu0 0.0
    %106 = vmatpush.msra.mxu0 0.0
    %107 = vmatpush.msra.mxu0 0.0
    %108 = vmatpush.msra.mxu0 0.0
    %109 = vmatpush.msra.mxu0 0.0
    %110 = vmatpush.msra.mxu0 0.0
    %111 = vmatpush.msra.mxu0 0.0
    %112 = vmatpush.msra.mxu0 0.0
    %113 = vmatpush.msra.mxu0 0.0
    %114 = vmatpush.msra.mxu0 0.0
    %115 = vmatpush.msra.mxu0 %v69
    %116 = vmatpush.msra.mxu0 %v66
    %117 = vmatpush.msra.mxu0 %v63
    %118 = vmatpush.msra.mxu0 %v60
    %119 = vmatmul.f32.gmra.mxu0 %v81
    %v120 = vpop.f32.mrf.mxu0
    %v121 = vadd.f32 %v74, %v120
    %122 = vdwg.mxu0
    %123 = vmatpush.msra.mxu0 0.0
    %124 = vmatpush.msra.mxu0 0.0
    %125 = vmatpush.msra.mxu0 0.0
    %126 = vmatpush.msra.mxu0 0.0
    %127 = vmatpush.msra.mxu0 0.0
    %128 = vmatpush.msra.mxu0 0.0
    %129 = vmatpush.msra.mxu0 0.0
    %130 = vmatpush.msra.mxu0 0.0
    %131 = vmatpush.msra.mxu0 0.0
    %132 = vmatpush.msra.mxu0 0.0
    %133 = vmatpush.msra.mxu0 0.0
    %134 = vmatpush.msra.mxu0 0.0
    %135 = vmatpush.msra.mxu0 %v70
    %136 = vmatpush.msra.mxu0 %v67
    %137 = vmatpush.msra.mxu0 %v64
    %138 = vmatpush.msra.mxu0 %v61
    %139 = vmatmul.f32.gmra.mxu0 %v81
    %v140 = vpop.f32.mrf.mxu0
    %v141 = vadd.f32 %v75, %v140
    %142 = vdwg.mxu0
    %143 = vmax.xlane.f32.xlu0 %v101
    %v144 = vpop.xlane.xlu0 %143
    %v145 = vsub.f32 %v101, %v144
    %v146 = vmul.f32 %v145, 1.442695
    %v147 = vpow.pop %v146
    %148 = vadd.xlane.f32.xlu0 %v147
    %v149 = vpop.xlane.xlu0 %148
    %v150 = vrcp.pop %v149
    %v151 = vmul.f32 %v149, %v150
    %v152 = vsub.f32 2.0, %v151
    %v153 = vmul.f32 %v150, %v152
    %v154 = vmul.f32 %v147, %v153
    %v155 = vadd.f32 %v154, 0.0
    %156 = vmax.xlane.f32.xlu0 %v121
    %v157 = vpop.xlane.xlu0 %156
    %v158 = vsub.f32 %v121, %v157
    %v159 = vmul.f32 %v158, 1.442695
    %v160 = vpow.pop %v159
    %161 = vadd.xlane.f32.xlu0 %v160
    %v162 = vpop.xlane.xlu0 %161
    %v163 = vrcp.pop %v162
    %v164 = vmul.f32 %v162, %v163
    %v165 = vsub.f32 2.0, %v164
    %v166 = vmul.f32 %v163, %v165
    %v167 = vmul.f32 %v160, %v166
    %v168 = vadd.f32 %v155, %v167
    %169 = vmax.xlane.f32.xlu0 %v141
    %v170 = vpop.xlane.xlu0 %169
    %v171 = vsub.f32 %v141, %v170
    %v172 = vmul.f32 %v171, 1.442695
    %v173 = vpow.pop %v172
    %174 = vadd.xlane.f32.xlu0 %v173
    %v175 = vpop.xlane.xlu0 %174
    %v176 = vrcp.pop %v175
    %v177 = vmul.f32 %v175, %v176
    %v178 = vsub.f32 2.0, %v177
    %v179 = vmul.f32 %v176, %v178
    %v180 = vmul.f32 %v173, %v179
    %v181 = vadd.f32 %v168, %v180
    %v182 = vmul.f32 %v181, 0.33333334
    %183 = vst [vmem:[#allocation8] sm:$0xff] %v182
    // Predicated region
    $region26: #{tpu_custom_call.1} parent=1 // pred_check
      _
    $region27: #{tpu_custom_call.1} parent=1 // pred_check_branch
      %185 = sbr.rel (0) target = $region29
    $region28: #{tpu_custom_call.1} parent=1 // pred_region
      %187 = vsyncadd [#allocation4], 0
      %s189 = sshll.u32 [#allocation8], 4
      %s190 = int_to_ptr.vmem [resolvable:$true] %s189
      %s191 = sshll.u32 %s3, 4
      %s192 = int_to_ptr.hbm [resolvable:$true] %s191
      %194 = dma.vmem_to_hbm [thread:$0]  %s190, 128, %s192, [#allocation4]
    $region29: #{tpu_custom_call.1} parent=1 // pred_fallthru
      _
    // Predicated region
    $region30: #{tpu_custom_call.1} parent=1 // pred_check
      _
    $region31: #{tpu_custom_call.1} parent=1 // pred_check_branch
      %196 = sbr.rel (0) target = $region33
    $region32: #{tpu_custom_call.1} parent=1 // pred_region
      %198 = dma.done [#allocation4], 128
    $region33: #{tpu_custom_call.1} parent=1 // pred_fallthru
      _
    %199 = vsyncpa [#allocation3], 1
    %200 = vsyncpa [#allocation6], 1
    %201 = vsyncpa [#allocation4], 1

</llo_original>
